<compile_context>
chip_gen: v6e
topology: v6e:2x2x1
jax: 0.10.0
libtpu: 0.0.40
codegen_flags: <defaults>
</compile_context>

<pallas_src>
import jax
import jax.numpy as jnp
from jax import lax
from jax.experimental import pallas as pl
from jax.experimental.pallas import tpu as pltpu


_INV_SQRT2 = 0.7071067811865476


def gpt2_mlp_kernel(x_ref, ln_g_ref, ln_b_ref,
                    w_fc_ref, b_fc_ref, w_pr_ref, b_pr_ref,
                    o_ref, xn_ref, acc_ref):
    """One (row-tile i, hidden-tile k) grid step.

    x_ref:    (tm, C)  f32 input rows (same block for all k of a given i)
    ln_g_ref: (1, C)   f32 LayerNorm weight
    ln_b_ref: (1, C)   f32 LayerNorm bias
    w_fc_ref: (C, th)  bf16 slice of first linear weight
    b_fc_ref: (1, th)  f32 slice of first linear bias
    w_pr_ref: (th, C)  bf16 slice of second linear weight
    b_pr_ref: (1, C)   f32 second linear bias
    o_ref:    (tm, C)  output rows (written once, at k == last)
    xn_ref:   (tm, C)  bf16 VMEM scratch: LayerNorm output, reused across k
    acc_ref:  (tm, C)  f32 VMEM scratch: c_proj accumulator
    """
    k = pl.program_id(1)

    # --- LayerNorm once per row tile (k == 0), keep result resident as bf16 ---
    @pl.when(k == 0)
    def _():
        x = x_ref[...].astype(jnp.float32)
        mean = jnp.mean(x, axis=-1, keepdims=True)
        xc = x - mean
        var = jnp.mean(xc * xc, axis=-1, keepdims=True)
        xn = xc * lax.rsqrt(var + 1e-5)
        xn = xn * ln_g_ref[...] + ln_b_ref[...]
        xn_ref[...] = xn.astype(xn_ref.dtype)
        acc_ref[...] = jnp.zeros_like(acc_ref)

    # --- c_fc slice: (tm, C) @ (C, th), bf16 operands, f32 accumulation ---
    h = jnp.dot(xn_ref[...], w_fc_ref[...], preferred_element_type=jnp.float32)
    h = h + b_fc_ref[...]

    # --- GELU (exact, erf-based, matching nn.GELU() default) in f32 ---
    h = 0.5 * h * (1.0 + lax.erf(h * jnp.float32(_INV_SQRT2)))

    # --- c_proj slice: (tm, th) @ (th, C), accumulate in f32 scratch ---
    acc_ref[...] += jnp.dot(h.astype(jnp.bfloat16), w_pr_ref[...],
                            preferred_element_type=jnp.float32)

    # --- finalize: add output bias, store once ---
    @pl.when(k == pl.num_programs(1) - 1)
    def _():
        # Dropout: eval mode -> identity.
        o_ref[...] = (acc_ref[...] + b_pr_ref[...]).astype(o_ref.dtype)


def gpt2_mlp(x, ln_g, ln_b, w_fc, b_fc, w_pr, b_pr,
             *, row_tile=256, hidden_tile=512, out_dtype=None):
    """x: (B, T, C) f32/bf16. Weights in 'math' layout: w_fc (C,4C), w_pr (4C,C)."""
    B, T, C = x.shape
    H = w_fc.shape[1]
    M = B * T
    out_dtype = x.dtype if out_dtype is None else out_dtype

    # Row tiling (parallel axis). Pad M up so the grid divides evenly.
    tm = min(row_tile, M)
    n_row = pl.cdiv(M, tm)
    Mp = n_row * tm
    x2 = x.reshape(M, C)
    if Mp != M:
        x2 = jnp.pad(x2, ((0, Mp - M), (0, 0)))

    # Hidden tiling (reduction / arbitrary axis).
    th = min(hidden_tile, H)
    assert H % th == 0, "hidden_tile must divide 4*n_embd"
    n_hid = H // th

    # bf16 matmul operands (MXU rate + halved weight VMEM/HBM traffic);
    # biases and LN params stay f32.
    w_fc_b = w_fc.astype(jnp.bfloat16)
    w_pr_b = w_pr.astype(jnp.bfloat16)
    ln_g2 = ln_g.reshape(1, C).astype(jnp.float32)
    ln_b2 = ln_b.reshape(1, C).astype(jnp.float32)
    b_fc2 = b_fc.reshape(1, H).astype(jnp.float32)
    b_pr2 = b_pr.reshape(1, C).astype(jnp.float32)

    cost = pl.CostEstimate(
        flops=4 * Mp * C * H,                 # two matmuls: 2*M*C*H each
        transcendentals=Mp * H,               # erf per hidden activation
        bytes_accessed=(x2.size * x2.dtype.itemsize
                        + w_fc_b.size * 2 + w_pr_b.size * 2
                        + (b_fc2.size + b_pr2.size + ln_g2.size + ln_b2.size) * 4
                        + Mp * C * jnp.dtype(out_dtype).itemsize),
    )

    out2 = pl.pallas_call(
        gpt2_mlp_kernel,
        out_shape=jax.ShapeDtypeStruct((Mp, C), out_dtype),
        grid_spec=pltpu.PrefetchScalarGridSpec(
            num_scalar_prefetch=0,
            grid=(n_row, n_hid),
            in_specs=[
                pl.BlockSpec((tm, C), lambda i, k: (i, 0)),   # x rows
                pl.BlockSpec((1, C), lambda i, k: (0, 0)),    # ln weight
                pl.BlockSpec((1, C), lambda i, k: (0, 0)),    # ln bias
                pl.BlockSpec((C, th), lambda i, k: (0, k)),   # c_fc weight slice
                pl.BlockSpec((1, th), lambda i, k: (0, k)),   # c_fc bias slice
                pl.BlockSpec((th, C), lambda i, k: (k, 0)),   # c_proj weight slice
                pl.BlockSpec((1, C), lambda i, k: (0, 0)),    # c_proj bias
            ],
            out_specs=pl.BlockSpec((tm, C), lambda i, k: (i, 0)),
            scratch_shapes=[
                pltpu.VMEM((tm, C), jnp.bfloat16),   # LN output, reused across k
                pltpu.VMEM((tm, C), jnp.float32),    # c_proj f32 accumulator
            ],
        ),
        compiler_params=pltpu.CompilerParams(
            dimension_semantics=("parallel", "arbitrary"),
            vmem_limit_bytes=48 * 1024 * 1024,
        ),
        cost_estimate=cost,
    )(x2, ln_g2, ln_b2, w_fc_b, b_fc2, w_pr_b, b_pr2)

    if Mp != M:
        out2 = out2[:M]
    return out2.reshape(B, T, C)


def reference_mlp(x, ln_g, ln_b, w_fc, b_fc, w_pr, b_pr):
    mean = jnp.mean(x, axis=-1, keepdims=True)
    var = jnp.mean((x - mean) ** 2, axis=-1, keepdims=True)
    xn = (x - mean) / jnp.sqrt(var + 1e-5) * ln_g + ln_b
    h = xn @ w_fc + b_fc
    h = jax.nn.gelu(h, approximate=False)
    y = h @ w_pr + b_pr
    return y


if __name__ == "__main__":
    # Small GPT-2 style config that still exercises the 2-D tiling:
    # batch=2, seq=64, n_embd=128, hidden=512; grid = (2 row tiles, 2 h tiles).
    B, T, C = 2, 64, 128
    H = 4 * C

    key = jax.random.PRNGKey(0)
    kx, kfc, kbfc, kpr, kbpr = jax.random.split(key, 5)

    x = jax.random.normal(kx, (B, T, C), dtype=jnp.float32)

    # Parameters (deterministic). PyTorch Linear stores (out,in); we store
    # the transposed (in,out) layout directly.
    ln_g = jnp.ones((C,), jnp.float32)
    ln_b = jnp.zeros((C,), jnp.float32)
    w_fc = jax.random.normal(kfc, (C, H), dtype=jnp.float32) * 0.02
    b_fc = jax.random.normal(kbfc, (H,), dtype=jnp.float32) * 0.02
    w_pr = jax.random.normal(kpr, (H, C), dtype=jnp.float32) * 0.02
    b_pr = jax.random.normal(kbpr, (C,), dtype=jnp.float32) * 0.02

    out = gpt2_mlp(x, ln_g, ln_b, w_fc, b_fc, w_pr, b_pr,
                   row_tile=64, hidden_tile=256)
    out = jax.block_until_ready(out)

    ref = reference_mlp(x, ln_g, ln_b, w_fc, b_fc, w_pr, b_pr)
    assert out.shape == (B, T, C)
    # Tolerance loosened vs. pure-f32: matmul operands are bf16 (accumulation
    # and LN/GELU stay f32).
    assert jnp.allclose(out, ref, atol=1e-2, rtol=1e-2), (
        float(jnp.max(jnp.abs(out - ref))))

    print("KERNEL_OK")
</pallas_src>

<mosaic_0001>
module attributes {stable_mosaic.version = 11 : i64} {
  func.func @gpt2_mlp_kernel(%arg0: i32, %arg1: i32, %arg2: memref<64x128xf32, #tpu.memory_space<vmem>>, %arg3: memref<1x128xf32, #tpu.memory_space<vmem>>, %arg4: memref<1x128xf32, #tpu.memory_space<vmem>>, %arg5: memref<128x256xbf16, #tpu.memory_space<vmem>>, %arg6: memref<1x256xf32, #tpu.memory_space<vmem>>, %arg7: memref<256x128xbf16, #tpu.memory_space<vmem>>, %arg8: memref<1x128xf32, #tpu.memory_space<vmem>>, %arg9: memref<64x128xf32, #tpu.memory_space<vmem>>, %arg10: memref<64x128xbf16, #tpu.memory_space<vmem>>, %arg11: memref<64x128xf32, #tpu.memory_space<vmem>>) attributes {dimension_semantics = [#tpu.dimension_semantics<parallel>, #tpu.dimension_semantics<arbitrary>], iteration_bounds = array<i64: 2, 2>, scalar_prefetch = 0 : i64, scratch_operands = 2 : i64, tpu.core_type = #tpu.core_type<tc>, window_params = [{transform_indices = @transform_0, window_bounds = array<i64: 64, 128>}, {pipeline_mode = #tpu.pipeline_mode<synchronous>, transform_indices = @transform_1, window_bounds = array<i64: 1, 128>}, {pipeline_mode = #tpu.pipeline_mode<synchronous>, transform_indices = @transform_2, window_bounds = array<i64: 1, 128>}, {transform_indices = @transform_3, window_bounds = array<i64: 128, 256>}, {transform_indices = @transform_4, window_bounds = array<i64: 1, 256>}, {transform_indices = @transform_5, window_bounds = array<i64: 256, 128>}, {pipeline_mode = #tpu.pipeline_mode<synchronous>, transform_indices = @transform_6, window_bounds = array<i64: 1, 128>}, {transform_indices = @transform_7, window_bounds = array<i64: 64, 128>}]} {
    %c0_i32 = arith.constant 0 : i32
    %0 = arith.cmpi eq, %arg1, %c0_i32 : i32
    %1 = arith.extui %0 : i1 to i32
    %c0_i32_0 = arith.constant 0 : i32
    %2 = arith.cmpi ne, %1, %c0_i32_0 : i32
    scf.if %2 {
      %c0_17 = arith.constant 0 : index
      %c0_18 = arith.constant 0 : index
      %26 = vector.load %arg2[%c0_17, %c0_18] : memref<64x128xf32, #tpu.memory_space<vmem>>, vector<64x128xf32>
      %cst_19 = arith.constant dense<0.000000e+00> : vector<64xf32>
      %27 = vector.multi_reduction <add>, %26, %cst_19 [1] : vector<64x128xf32> to vector<64xf32>
      %28 = vector.shape_cast %27 : vector<64xf32> to vector<64x1xf32>
      %cst_20 = arith.constant 1.280000e+02 : f32
      %29 = vector.broadcast %cst_20 : f32 to vector<64x1xf32>
      %30 = arith.divf %28, %29 : vector<64x1xf32>
      %31 = vector.broadcast %30 : vector<64x1xf32> to vector<64x128xf32>
      %32 = arith.subf %26, %31 : vector<64x128xf32>
      %33 = arith.mulf %32, %32 : vector<64x128xf32>
      %cst_21 = arith.constant dense<0.000000e+00> : vector<64xf32>
      %34 = vector.multi_reduction <add>, %33, %cst_21 [1] : vector<64x128xf32> to vector<64xf32>
      %35 = vector.shape_cast %34 : vector<64xf32> to vector<64x1xf32>
      %cst_22 = arith.constant 1.280000e+02 : f32
      %36 = vector.broadcast %cst_22 : f32 to vector<64x1xf32>
      %37 = arith.divf %35, %36 : vector<64x1xf32>
      %cst_23 = arith.constant 9.99999974E-6 : f32
      %38 = vector.broadcast %cst_23 : f32 to vector<64x1xf32>
      %39 = arith.addf %37, %38 : vector<64x1xf32>
      %40 = math.rsqrt %39 : vector<64x1xf32>
      %41 = vector.broadcast %40 : vector<64x1xf32> to vector<64x128xf32>
      %42 = arith.mulf %32, %41 : vector<64x128xf32>
      %c0_24 = arith.constant 0 : index
      %c0_25 = arith.constant 0 : index
      %43 = vector.load %arg3[%c0_24, %c0_25] : memref<1x128xf32, #tpu.memory_space<vmem>>, vector<1x128xf32>
      %44 = vector.broadcast %43 : vector<1x128xf32> to vector<64x128xf32>
      %45 = arith.mulf %42, %44 : vector<64x128xf32>
      %c0_26 = arith.constant 0 : index
      %c0_27 = arith.constant 0 : index
      %46 = vector.load %arg4[%c0_26, %c0_27] : memref<1x128xf32, #tpu.memory_space<vmem>>, vector<1x128xf32>
      %47 = vector.broadcast %46 : vector<1x128xf32> to vector<64x128xf32>
      %48 = arith.addf %45, %47 : vector<64x128xf32>
      %49 = arith.truncf %48 : vector<64x128xf32> to vector<64x128xbf16>
      %c0_28 = arith.constant 0 : index
      %c0_29 = arith.constant 0 : index
      %50 = vector.load %arg10[%c0_28, %c0_29] : memref<64x128xbf16, #tpu.memory_space<vmem>>, vector<64x128xbf16>
      tpu.vector_store %arg10[%c0_28, %c0_29], %49 {strides = array<i32>} : memref<64x128xbf16, #tpu.memory_space<vmem>>, vector<64x128xbf16>,
      %cst_30 = arith.constant 0.000000e+00 : f32
      %51 = vector.broadcast %cst_30 : f32 to vector<64x128xf32>
      %c0_31 = arith.constant 0 : index
      %c0_32 = arith.constant 0 : index
      %52 = vector.load %arg11[%c0_31, %c0_32] : memref<64x128xf32, #tpu.memory_space<vmem>>, vector<64x128xf32>
      tpu.vector_store %arg11[%c0_31, %c0_32], %51 {strides = array<i32>} : memref<64x128xf32, #tpu.memory_space<vmem>>, vector<64x128xf32>,
    } else {
    }
    %c0 = arith.constant 0 : index
    %c0_1 = arith.constant 0 : index
    %3 = vector.load %arg10[%c0, %c0_1] : memref<64x128xbf16, #tpu.memory_space<vmem>>, vector<64x128xbf16>
    %c0_2 = arith.constant 0 : index
    %c0_3 = arith.constant 0 : index
    %4 = vector.load %arg5[%c0_2, %c0_3] : memref<128x256xbf16, #tpu.memory_space<vmem>>, vector<128x256xbf16>
    %cst = arith.constant dense<0.000000e+00> : vector<64x256xf32>
    %5 = tpu.matmul %3, %4, %cst {dimension_numbers = #tpu.dot_dimension_numbers<[1], [0], [0], [1], [0, 0, 1, 1], [], []>} : vector<64x128xbf16>, vector<128x256xbf16>, vector<64x256xf32> -> vector<64x256xf32>
    %c0_4 = arith.constant 0 : index
    %c0_5 = arith.constant 0 : index
    %6 = vector.load %arg6[%c0_4, %c0_5] : memref<1x256xf32, #tpu.memory_space<vmem>>, vector<1x256xf32>
    %7 = vector.broadcast %6 : vector<1x256xf32> to vector<64x256xf32>
    %8 = arith.addf %5, %7 : vector<64x256xf32>
    %cst_6 = arith.constant 5.000000e-01 : f32
    %9 = vector.broadcast %cst_6 : f32 to vector<64x256xf32>
    %10 = arith.mulf %9, %8 : vector<64x256xf32>
    %cst_7 = arith.constant 0.707106769 : f32
    %11 = vector.broadcast %cst_7 : f32 to vector<64x256xf32>
    %12 = arith.mulf %8, %11 : vector<64x256xf32>
    %13 = math.erf %12 : vector<64x256xf32>
    %cst_8 = arith.constant 1.000000e+00 : f32
    %14 = vector.broadcast %cst_8 : f32 to vector<64x256xf32>
    %15 = arith.addf %14, %13 : vector<64x256xf32>
    %16 = arith.mulf %10, %15 : vector<64x256xf32>
    %c0_9 = arith.constant 0 : index
    %c0_10 = arith.constant 0 : index
    %17 = vector.load %arg11[%c0_9, %c0_10] : memref<64x128xf32, #tpu.memory_space<vmem>>, vector<64x128xf32>
    %18 = arith.truncf %16 : vector<64x256xf32> to vector<64x256xbf16>
    %c0_11 = arith.constant 0 : index
    %c0_12 = arith.constant 0 : index
    %19 = vector.load %arg7[%c0_11, %c0_12] : memref<256x128xbf16, #tpu.memory_space<vmem>>, vector<256x128xbf16>
    %cst_13 = arith.constant dense<0.000000e+00> : vector<64x128xf32>
    %20 = tpu.matmul %18, %19, %cst_13 {dimension_numbers = #tpu.dot_dimension_numbers<[1], [0], [0], [1], [0, 0, 1, 1], [], []>} : vector<64x256xbf16>, vector<256x128xbf16>, vector<64x128xf32> -> vector<64x128xf32>
    %21 = arith.addf %17, %20 : vector<64x128xf32>
    %c0_14 = arith.constant 0 : index
    %c0_15 = arith.constant 0 : index
    %22 = vector.load %arg11[%c0_14, %c0_15] : memref<64x128xf32, #tpu.memory_space<vmem>>, vector<64x128xf32>
    tpu.vector_store %arg11[%c0_14, %c0_15], %21 {strides = array<i32>} : memref<64x128xf32, #tpu.memory_space<vmem>>, vector<64x128xf32>,
    %c1_i32 = arith.constant 1 : i32
    %23 = arith.cmpi eq, %arg1, %c1_i32 : i32
    %24 = arith.extui %23 : i1 to i32
    %c0_i32_16 = arith.constant 0 : i32
    %25 = arith.cmpi ne, %24, %c0_i32_16 : i32
    scf.if %25 {
      %c0_17 = arith.constant 0 : index
      %c0_18 = arith.constant 0 : index
      %26 = vector.load %arg11[%c0_17, %c0_18] : memref<64x128xf32, #tpu.memory_space<vmem>>, vector<64x128xf32>
      %c0_19 = arith.constant 0 : index
      %c0_20 = arith.constant 0 : index
      %27 = vector.load %arg8[%c0_19, %c0_20] : memref<1x128xf32, #tpu.memory_space<vmem>>, vector<1x128xf32>
      %28 = vector.broadcast %27 : vector<1x128xf32> to vector<64x128xf32>
      %29 = arith.addf %26, %28 : vector<64x128xf32>
      %c0_21 = arith.constant 0 : index
      %c0_22 = arith.constant 0 : index
      %30 = vector.load %arg9[%c0_21, %c0_22] : memref<64x128xf32, #tpu.memory_space<vmem>>, vector<64x128xf32>
      tpu.vector_store %arg9[%c0_21, %c0_22], %29 {strides = array<i32>} : memref<64x128xf32, #tpu.memory_space<vmem>>, vector<64x128xf32>,
    } else {
    }
    return
  }
  func.func @transform_0(%arg0: i32, %arg1: i32) -> (i32, i32) {
    %c0_i32 = arith.constant 0 : i32
    %c0_i32_0 = arith.constant 0 : i32
    return %arg0, %c0_i32 : i32, i32
  }
  func.func @transform_1(%arg0: i32, %arg1: i32) -> (i32, i32) {
    %c0_i32 = arith.constant 0 : i32
    %c0_i32_0 = arith.constant 0 : i32
    %c0_i32_1 = arith.constant 0 : i32
    return %c0_i32, %c0_i32_0 : i32, i32
  }
  func.func @transform_2(%arg0: i32, %arg1: i32) -> (i32, i32) {
    %c0_i32 = arith.constant 0 : i32
    %c0_i32_0 = arith.constant 0 : i32
    %c0_i32_1 = arith.constant 0 : i32
    return %c0_i32, %c0_i32_0 : i32, i32
  }
  func.func @transform_3(%arg0: i32, %arg1: i32) -> (i32, i32) {
    %c0_i32 = arith.constant 0 : i32
    %c0_i32_0 = arith.constant 0 : i32
    return %c0_i32, %arg1 : i32, i32
  }
  func.func @transform_4(%arg0: i32, %arg1: i32) -> (i32, i32) {
    %c0_i32 = arith.constant 0 : i32
    %c0_i32_0 = arith.constant 0 : i32
    return %c0_i32, %arg1 : i32, i32
  }
  func.func @transform_5(%arg0: i32, %arg1: i32) -> (i32, i32) {
    %c0_i32 = arith.constant 0 : i32
    %c0_i32_0 = arith.constant 0 : i32
    return %arg1, %c0_i32 : i32, i32
  }
  func.func @transform_6(%arg0: i32, %arg1: i32) -> (i32, i32) {
    %c0_i32 = arith.constant 0 : i32
    %c0_i32_0 = arith.constant 0 : i32
    %c0_i32_1 = arith.constant 0 : i32
    return %c0_i32, %c0_i32_0 : i32, i32
  }
  func.func @transform_7(%arg0: i32, %arg1: i32) -> (i32, i32) {
    %c0_i32 = arith.constant 0 : i32
    %c0_i32_0 = arith.constant 0 : i32
    return %arg0, %c0_i32 : i32, i32
  }
}

</mosaic_0001>

<llo_original>
// kernel: tpu_custom_call.1
$region0: #{tpu_custom_call.1}
  #allocation0 [shape = 'u32[]', space=smem, size = 0x4, offset = 0x4, fixed_abs, tag = 'smem constant byte address 0x4 - core index']
  #allocation1 [shape = 'u32[144,128]{1,0:T(1,128)}', space=vmem, size = 0x12000, scoped, tag = 'internal scratch']
  #allocation2 [shape = 'bf16[64,128]{1,0:T(8,128)(2,1)}', space=vmem, size = 0x4000, scoped, tag = 'scratch operand']
  #allocation3 [shape = 'f32[64,128]{1,0:T(8,128)}', space=vmem, size = 0x8000, scoped, tag = 'scratch operand']
  %s0 = inlined_call_operand.hbm [shape: f32[128,128], index: 0, kind: input, shape index: {}]
  %s1 = inlined_call_operand.vmem [shape: f32[1,128], index: 1, kind: input, shape index: {}]
  %s2 = inlined_call_operand.vmem [shape: f32[1,128], index: 2, kind: input, shape index: {}]
  %s3 = inlined_call_operand.hbm [shape: bf16[128,512], index: 3, kind: input, shape index: {}]
  %s4 = inlined_call_operand.vmem [shape: f32[1,512], index: 4, kind: input, shape index: {}]
  %s5 = inlined_call_operand.hbm [shape: bf16[512,128], index: 5, kind: input, shape index: {}]
  %s6 = inlined_call_operand.vmem [shape: f32[1,128], index: 6, kind: input, shape index: {}]
  %s7 = inlined_call_operand.hbm [shape: f32[128,128], index: 7, kind: output, shape index: {}]
  %s8 = sld [smem:[#allocation0]]
  $region81: #{tpu_custom_call.1} parent=0
    _
  %s10 = ssub.s32 1, %s8
  %s11 = scalar_select 0, %s10, %s8
  $region1: #{tpu_custom_call.1} parent=0
    #allocation4 [shape = 'u8[65536]{0}', space=vmem, size = 0x10000, scoped, tag = 'input window, operand 0']
    #allocation5 [shape = 's32[2]{0}', space=sflag, size = 0x8, scoped, tag = 'scoped memory for tpu_custom_call.1']
    #allocation6 [shape = 's32[2]{0}', space=sflag, size = 0x8, scoped, tag = 'scoped memory for tpu_custom_call.1']
    #allocation7 [shape = 'u8[131072]{0}', space=vmem, size = 0x20000, scoped, tag = 'input window, operand 3']
    #allocation8 [shape = 's32[2]{0}', space=sflag, size = 0x8, scoped, tag = 'scoped memory for tpu_custom_call.1']
    #allocation9 [shape = 'u8[131072]{0}', space=vmem, size = 0x20000, scoped, tag = 'input window, operand 5']
    #allocation10 [shape = 'u8[65536]{0}', space=vmem, size = 0x10000, scoped, tag = 'output window, operand 0']
    %12 = vsyncpa [#allocation5], 0
    %s13 = scalar_lea.sflag [#allocation5], 1
    %14 = vsyncpa %s13, 0
    %15 = vsyncpa [#allocation8], 0
    %s16 = scalar_lea.sflag [#allocation8], 1
    %17 = vsyncpa %s16, 0
    %18 = vsyncpa [#allocation6], 0
    %s19 = scalar_lea.sflag [#allocation6], 1
    %20 = vsyncpa %s19, 0
    loop: start=0, step=1, limit=6
    $region2: #{tpu_custom_call.1} parent=1 // loop_pre_header
      _
    $region3: #{tpu_custom_call.1} parent=1 // loop_header
      %s22 = sphi 0, %s26
      %p23 = scmp.ge.s32.totalorder %s22, 6
      %s29 = sphi 0, %s41
      %s30 = sphi 0, %s37
      %s31 = sphi 0, %s29
      %s32 = sphi 0, %s30
      %s33 = sphi 0, %s31
      %s34 = sphi 0, %s32
      %s44 = sphi 0, %s46
      %s47 = sphi 0, %s44
      %s48 = sphi 0, %s47
      %s64 = sphi 0, %s48
      %s68 = sphi 0, %s68
      %s70 = sphi 0, %s68
      %s71 = sphi 0, %s70
      %s85 = sphi 0, %s71
      %s89 = sphi 0, %s89
      %s91 = sphi 0, %s89
      %s92 = sphi 0, %s91
      %s106 = sphi 0, %s92
      %s112 = sphi 0, %s114
      %s115 = sphi 0, %s112
      %s116 = sphi 0, %s115
      %s132 = sphi 0, %s116
      %s138 = sphi 0, %s140
      %s141 = sphi 0, %s138
      %s142 = sphi 0, %s141
      %s158 = sphi 0, %s142
      %s164 = sphi 0, %s166
      %s167 = sphi 0, %s164
      %s168 = sphi 0, %s167
      %s184 = sphi 0, %s168
      %s188 = sphi 0, %s188
      %s190 = sphi 0, %s188
      %s191 = sphi 0, %s190
      %s205 = sphi 0, %s191
      %s211 = sphi 0, %s213
      %s214 = sphi 0, %s211
      %s215 = sphi 0, %s214
      %s231 = sphi 0, %s215
    $region4: #{tpu_custom_call.1} parent=1 // loop_header_branch
      %25 = sbr.rel (%p23) target = $region8
    $region5: #{tpu_custom_call.1} parent=1 // loop_body
      %s27 = ssub.s32 %s22, 1
      %s28 = ssub.s32 %s22, 2
      %s35 = sadd.s32 1, %s30
      %p36 = scmp.ge.s32.totalorder %s35, 2
      %s37 = scalar_select %p36, 0, %s35
      %s38 = sadd.s32 1, %s29
      %s39 = scalar_select %p36, %s38, %s29
      %p40 = scmp.ge.s32.totalorder %s39, 2
      %s41 = scalar_select %p40, 0, %s39
      %s42 = ssub.s32 %s29, %s41
      %p43 = scmp.eq.s32.totalorder %s42, 0
      %s45 = sadd.s32 %s44, 1
      %s46 = scalar_select %p43, %s44, %s45
      %p49 = pneg %p43
      %p50 = scmp.eq.s32.totalorder %s22, 3
      %p51 = por %p49, %p50
      %p52 = scmp.ne.s32.totalorder %s44, %s47
      %p53 = scmp.eq.s32.totalorder %s22, 0
      %p54 = por %p52, %p53
      %p55 = scmp.ne.s32.totalorder %s44, %s47
      %p56 = scmp.eq.s32.totalorder %s27, 3
      %p57 = por %p55, %p56
      %p58 = scmp.ne.s32.totalorder %s47, %s48
      %p59 = scmp.eq.s32.totalorder %s27, 0
      %p60 = por %p58, %p59
      %p61 = scmp.ne.s32.totalorder %s47, %s48
      %p62 = scmp.eq.s32.totalorder %s28, 3
      %p63 = por %p61, %p62
      %p65 = scmp.ne.s32.totalorder %s48, %s64
      %p66 = scmp.eq.s32.totalorder %s28, 0
      %p67 = por %p65, %p66
      %s69 = sadd.s32 %s68, 1
      %p72 = scmp.eq.s32.totalorder %s22, 3
      %p73 = scmp.ne.s32.totalorder %s68, %s70
      %p74 = scmp.eq.s32.totalorder %s22, 0
      %p75 = por %p73, %p74
      %p76 = scmp.ne.s32.totalorder %s68, %s70
      %p77 = scmp.eq.s32.totalorder %s27, 3
      %p78 = por %p76, %p77
      %p79 = scmp.ne.s32.totalorder %s70, %s71
      %p80 = scmp.eq.s32.totalorder %s27, 0
      %p81 = por %p79, %p80
      %p82 = scmp.ne.s32.totalorder %s70, %s71
      %p83 = scmp.eq.s32.totalorder %s28, 3
      %p84 = por %p82, %p83
      %p86 = scmp.ne.s32.totalorder %s71, %s85
      %p87 = scmp.eq.s32.totalorder %s28, 0
      %p88 = por %p86, %p87
      %s90 = sadd.s32 %s89, 1
      %p93 = scmp.eq.s32.totalorder %s22, 3
      %p94 = scmp.ne.s32.totalorder %s89, %s91
      %p95 = scmp.eq.s32.totalorder %s22, 0
      %p96 = por %p94, %p95
      %p97 = scmp.ne.s32.totalorder %s89, %s91
      %p98 = scmp.eq.s32.totalorder %s27, 3
      %p99 = por %p97, %p98
      %p100 = scmp.ne.s32.totalorder %s91, %s92
      %p101 = scmp.eq.s32.totalorder %s27, 0
      %p102 = por %p100, %p101
      %p103 = scmp.ne.s32.totalorder %s91, %s92
      %p104 = scmp.eq.s32.totalorder %s28, 3
      %p105 = por %p103, %p104
      %p107 = scmp.ne.s32.totalorder %s92, %s106
      %p108 = scmp.eq.s32.totalorder %s28, 0
      %p109 = por %p107, %p108
      %s110 = ssub.s32 %s30, %s37
      %p111 = scmp.eq.s32.totalorder %s110, 0
      %s113 = sadd.s32 %s112, 1
      %s114 = scalar_select %p111, %s112, %s113
      %p117 = pneg %p111
      %p118 = scmp.eq.s32.totalorder %s22, 3
      %p119 = por %p117, %p118
      %p120 = scmp.ne.s32.totalorder %s112, %s115
      %p121 = scmp.eq.s32.totalorder %s22, 0
      %p122 = por %p120, %p121
      %p123 = scmp.ne.s32.totalorder %s112, %s115
      %p124 = scmp.eq.s32.totalorder %s27, 3
      %p125 = por %p123, %p124
      %p126 = scmp.ne.s32.totalorder %s115, %s116
      %p127 = scmp.eq.s32.totalorder %s27, 0
      %p128 = por %p126, %p127
      %p129 = scmp.ne.s32.totalorder %s115, %s116
      %p130 = scmp.eq.s32.totalorder %s28, 3
      %p131 = por %p129, %p130
      %p133 = scmp.ne.s32.totalorder %s116, %s132
      %p134 = scmp.eq.s32.totalorder %s28, 0
      %p135 = por %p133, %p134
      %s136 = ssub.s32 %s30, %s37
      %p137 = scmp.eq.s32.totalorder %s136, 0
      %s139 = sadd.s32 %s138, 1
      %s140 = scalar_select %p137, %s138, %s139
      %p143 = pneg %p137
      %p144 = scmp.eq.s32.totalorder %s22, 3
      %p145 = por %p143, %p144
      %p146 = scmp.ne.s32.totalorder %s138, %s141
      %p147 = scmp.eq.s32.totalorder %s22, 0
      %p148 = por %p146, %p147
      %p149 = scmp.ne.s32.totalorder %s138, %s141
      %p150 = scmp.eq.s32.totalorder %s27, 3
      %p151 = por %p149, %p150
      %p152 = scmp.ne.s32.totalorder %s141, %s142
      %p153 = scmp.eq.s32.totalorder %s27, 0
      %p154 = por %p152, %p153
      %p155 = scmp.ne.s32.totalorder %s141, %s142
      %p156 = scmp.eq.s32.totalorder %s28, 3
      %p157 = por %p155, %p156
      %p159 = scmp.ne.s32.totalorder %s142, %s158
      %p160 = scmp.eq.s32.totalorder %s28, 0
      %p161 = por %p159, %p160
      %s162 = ssub.s32 %s30, %s37
      %p163 = scmp.eq.s32.totalorder %s162, 0
      %s165 = sadd.s32 %s164, 1
      %s166 = scalar_select %p163, %s164, %s165
      %p169 = pneg %p163
      %p170 = scmp.eq.s32.totalorder %s22, 3
      %p171 = por %p169, %p170
      %p172 = scmp.ne.s32.totalorder %s164, %s167
      %p173 = scmp.eq.s32.totalorder %s22, 0
      %p174 = por %p172, %p173
      %p175 = scmp.ne.s32.totalorder %s164, %s167
      %p176 = scmp.eq.s32.totalorder %s27, 3
      %p177 = por %p175, %p176
      %p178 = scmp.ne.s32.totalorder %s167, %s168
      %p179 = scmp.eq.s32.totalorder %s27, 0
      %p180 = por %p178, %p179
      %p181 = scmp.ne.s32.totalorder %s167, %s168
      %p182 = scmp.eq.s32.totalorder %s28, 3
      %p183 = por %p181, %p182
      %p185 = scmp.ne.s32.totalorder %s168, %s184
      %p186 = scmp.eq.s32.totalorder %s28, 0
      %p187 = por %p185, %p186
      %s189 = sadd.s32 %s188, 1
      %p192 = scmp.eq.s32.totalorder %s22, 3
      %p193 = scmp.ne.s32.totalorder %s188, %s190
      %p194 = scmp.eq.s32.totalorder %s22, 0
      %p195 = por %p193, %p194
      %p196 = scmp.ne.s32.totalorder %s188, %s190
      %p197 = scmp.eq.s32.totalorder %s27, 3
      %p198 = por %p196, %p197
      %p199 = scmp.ne.s32.totalorder %s190, %s191
      %p200 = scmp.eq.s32.totalorder %s27, 0
      %p201 = por %p199, %p200
      %p202 = scmp.ne.s32.totalorder %s190, %s191
      %p203 = scmp.eq.s32.totalorder %s28, 3
      %p204 = por %p202, %p203
      %p206 = scmp.ne.s32.totalorder %s191, %s205
      %p207 = scmp.eq.s32.totalorder %s28, 0
      %p208 = por %p206, %p207
      %s209 = ssub.s32 %s29, %s41
      %p210 = scmp.eq.s32.totalorder %s209, 0
      %s212 = sadd.s32 %s211, 1
      %s213 = scalar_select %p210, %s211, %s212
      %p216 = pneg %p210
      %p217 = scmp.eq.s32.totalorder %s22, 3
      %p218 = por %p216, %p217
      %p219 = scmp.ne.s32.totalorder %s211, %s214
      %p220 = scmp.eq.s32.totalorder %s22, 0
      %p221 = por %p219, %p220
      %p222 = scmp.ne.s32.totalorder %s211, %s214
      %p223 = scmp.eq.s32.totalorder %s27, 3
      %p224 = por %p222, %p223
      %p225 = scmp.ne.s32.totalorder %s214, %s215
      %p226 = scmp.eq.s32.totalorder %s27, 0
      %p227 = por %p225, %p226
      %p228 = scmp.ne.s32.totalorder %s214, %s215
      %p229 = scmp.eq.s32.totalorder %s28, 3
      %p230 = por %p228, %p229
      %p232 = scmp.ne.s32.totalorder %s215, %s231
      %p233 = scmp.eq.s32.totalorder %s28, 0
      %p234 = por %p232, %p233
      %p235 = scmp.le.s32.totalorder 1, %s22
      %p236 = scmp.lt.s32.totalorder %s22, 5
      %p237 = pnand %p235, %p236
      %p238 = pneg %p237
      // Predicated region
      $region9: #{tpu_custom_call.1} parent=5 // pred_check
        _
      $region10: #{tpu_custom_call.1} parent=5 // pred_check_branch
        %240 = sbr.rel (%p237) target = $region12
      $region11: #{tpu_custom_call.1} parent=5 // pred_region
        %s241 = ssub.s32 %s22, 1
        // Predicated region
        $region13: #{tpu_custom_call.1} parent=11 // pred_check
          %p242 = pneg %p81
        $region14: #{tpu_custom_call.1} parent=11 // pred_check_branch
          %244 = sbr.rel (%p242) target = $region16
        $region15: #{tpu_custom_call.1} parent=11 // pred_region
          _
        $region16: #{tpu_custom_call.1} parent=11 // pred_fallthru
          _
        // Predicated region
        $region17: #{tpu_custom_call.1} parent=11 // pred_check
          %p245 = pneg %p102
        $region18: #{tpu_custom_call.1} parent=11 // pred_check_branch
          %247 = sbr.rel (%p245) target = $region20
        $region19: #{tpu_custom_call.1} parent=11 // pred_region
          _
        $region20: #{tpu_custom_call.1} parent=11 // pred_fallthru
          _
        // Predicated region
        $region21: #{tpu_custom_call.1} parent=11 // pred_check
          %p248 = pneg %p201
        $region22: #{tpu_custom_call.1} parent=11 // pred_check_branch
          %250 = sbr.rel (%p248) target = $region24
        $region23: #{tpu_custom_call.1} parent=11 // pred_region
          _
        $region24: #{tpu_custom_call.1} parent=11 // pred_fallthru
          _
      $region12: #{tpu_custom_call.1} parent=5 // pred_fallthru
        _
      %p251 = scmp.lt.s32.totalorder %s22, 4
      // Predicated region
      $region25: #{tpu_custom_call.1} parent=5 // pred_check
        %p252 = pneg %p251
      $region26: #{tpu_custom_call.1} parent=5 // pred_check_branch
        %254 = sbr.rel (%p252) target = $region28
      $region27: #{tpu_custom_call.1} parent=5 // pred_region
        // Predicated region
        $region29: #{tpu_custom_call.1} parent=27 // pred_check
          %p255 = pneg %p54
        $region30: #{tpu_custom_call.1} parent=27 // pred_check_branch
          %257 = sbr.rel (%p255) target = $region32
        $region31: #{tpu_custom_call.1} parent=27 // pred_region
          %s258 = sand.u32 %s44, 1
          %s259 = scalar_lea.sflag [#allocation5], %s258
          %s260 = sand.u32 %s44, 1
          %s261 = smul.addr %s260, 64
          %s262 = scalar_lea.vmem [#allocation4], %s261
          %s263 = smul.u32 8, %s29
          %s265 = ssub.s32 1024, 1024
          %266 = vsyncadd %s259, %s265
          %s267 = smul.addr %s263, 128
          %s268 = scalar_lea.hbm %s0, %s267
          %s269 = sshll.u32 %s262, 4
          %s270 = int_to_ptr.vmem [resolvable:$true] %s269
          %275 = dma.hbm_to_vmem [thread:$0]  %s268, 1024, %s270, %s259, 128, 128, 8
        $region32: #{tpu_custom_call.1} parent=27 // pred_fallthru
          _
        // Predicated region
        $region33: #{tpu_custom_call.1} parent=27 // pred_check
          %p276 = pneg %p122
        $region34: #{tpu_custom_call.1} parent=27 // pred_check_branch
          %278 = sbr.rel (%p276) target = $region36
        $region35: #{tpu_custom_call.1} parent=27 // pred_region
          %s279 = sand.u32 %s22, 1
          %s280 = scalar_lea.sflag [#allocation8], %s279
          %s281 = sand.u32 %s112, 1
          %s282 = smul.addr %s281, 128
          %s283 = scalar_lea.vmem [#allocation7], %s282
          %s284 = smul.u32 2, %s30
          %s286 = ssub.s32 2048, 2048
          %287 = vsyncadd %s280, %s286
          %s288 = smul.addr %s284, 64
          %s289 = scalar_lea.hbm %s3, %s288
          %s290 = sshll.u32 %s283, 4
          %s291 = int_to_ptr.vmem [resolvable:$true] %s290
          %296 = dma.hbm_to_vmem [thread:$0]  %s289, 2048, %s291, %s280, 256, 128, 8
        $region36: #{tpu_custom_call.1} parent=27 // pred_fallthru
          _
        // Predicated region
        $region37: #{tpu_custom_call.1} parent=27 // pred_check
          %p297 = pneg %p148
        $region38: #{tpu_custom_call.1} parent=27 // pred_check_branch
          %299 = sbr.rel (%p297) target = $region40
        $region39: #{tpu_custom_call.1} parent=27 // pred_region
          %s300 = smul.u32 2, %s30
          %p301 = scmp.lt.s32.totalorder %s300, 3
          %s302 = scalar_select %p301, %s300, 3
          %s303 = scalar_lea.vmem %s4, %s302
          %s304 = smul.u32 2, %s30
        $region40: #{tpu_custom_call.1} parent=27 // pred_fallthru
          _
        // Predicated region
        $region41: #{tpu_custom_call.1} parent=27 // pred_check
          %p305 = pneg %p174
        $region42: #{tpu_custom_call.1} parent=27 // pred_check_branch
          %307 = sbr.rel (%p305) target = $region44
        $region43: #{tpu_custom_call.1} parent=27 // pred_region
          %s308 = sand.u32 %s22, 1
          %s309 = scalar_lea.sflag [#allocation8], %s308
          %s310 = sand.u32 %s164, 1
          %s311 = smul.addr %s310, 128
          %s312 = scalar_lea.vmem [#allocation9], %s311
          %s313 = smul.u32 32, %s30
          %s315 = ssub.s32 2048, 2048
          %316 = vsyncadd %s309, %s315
          %s317 = smul.addr %s313, 64
          %s318 = scalar_lea.hbm %s5, %s317
          %s319 = sshll.u32 %s312, 4
          %s320 = int_to_ptr.vmem [resolvable:$true] %s319
          %325 = dma.hbm_to_vmem [thread:$0]  %s318, 2048, %s320, %s309, 64, 64, 4
        $region44: #{tpu_custom_call.1} parent=27 // pred_fallthru
          _
      $region28: #{tpu_custom_call.1} parent=5 // pred_fallthru
        _
      %p326 = scmp.le.s32.totalorder 1, %s22
      %p327 = scmp.lt.s32.totalorder %s22, 5
      %p328 = pnand %p326, %p327
      %p329 = pneg %p328
      // Predicated region
      $region45: #{tpu_custom_call.1} parent=5 // pred_check
        _
      $region46: #{tpu_custom_call.1} parent=5 // pred_check_branch
        %331 = sbr.rel (%p328) target = $region48
      $region47: #{tpu_custom_call.1} parent=5 // pred_region
        %s332 = ssub.s32 %s22, 1
        %s333 = sand.u32 %s47, 1
        %s334 = scalar_lea.sflag [#allocation5], %s333
        %s335 = sand.u32 %s47, 1
        %s336 = smul.addr %s335, 64
        %s337 = scalar_lea.vmem [#allocation4], %s336
        // Predicated region
        $region49: #{tpu_custom_call.1} parent=47 // pred_check
          %p338 = pneg %p60
        $region50: #{tpu_custom_call.1} parent=47 // pred_check_branch
          %340 = sbr.rel (%p338) target = $region52
        $region51: #{tpu_custom_call.1} parent=47 // pred_region
          %341 = dma.done %s334, 1024
        $region52: #{tpu_custom_call.1} parent=47 // pred_fallthru
          _
        %s342 = sand.u32 %s27, 1
        %s343 = scalar_lea.sflag [#allocation8], %s342
        %s344 = sand.u32 %s115, 1
        %s345 = smul.addr %s344, 128
        %s346 = scalar_lea.vmem [#allocation7], %s345
        // Predicated region
        $region53: #{tpu_custom_call.1} parent=47 // pred_check
          %p347 = pneg %p128
        $region54: #{tpu_custom_call.1} parent=47 // pred_check_branch
          %349 = sbr.rel (%p347) target = $region56
        $region55: #{tpu_custom_call.1} parent=47 // pred_region
          %350 = dma.done %s343, 2048
        $region56: #{tpu_custom_call.1} parent=47 // pred_fallthru
          _
        %s351 = sand.u32 %s27, 1
        %s352 = scalar_lea.sflag [#allocation8], %s351
        %s353 = sand.u32 %s167, 1
        %s354 = smul.addr %s353, 128
        %s355 = scalar_lea.vmem [#allocation9], %s354
        // Predicated region
        $region57: #{tpu_custom_call.1} parent=47 // pred_check
          %p356 = pneg %p180
        $region58: #{tpu_custom_call.1} parent=47 // pred_check_branch
          %358 = sbr.rel (%p356) target = $region60
        $region59: #{tpu_custom_call.1} parent=47 // pred_region
          %359 = dma.done %s352, 2048
        $region60: #{tpu_custom_call.1} parent=47 // pred_fallthru
          _
        %s360 = sand.u32 %s47, 1
        %s361 = scalar_lea.sflag [#allocation5], %s360
        %s362 = sand.u32 %s47, 1
        %s363 = smul.addr %s362, 64
        %s364 = scalar_lea.vmem [#allocation4], %s363
        %p365 = pneg %p60
        %p366 = pneg %p57
        %p367 = pneg %p81
        %p368 = pneg %p78
        %p369 = pneg %p102
        %p370 = pneg %p99
        %s371 = sand.u32 %s27, 1
        %s372 = scalar_lea.sflag [#allocation8], %s371
        %s373 = sand.u32 %s115, 1
        %s374 = smul.addr %s373, 128
        %s375 = scalar_lea.vmem [#allocation7], %s374
        %p376 = pneg %p128
        %p377 = pneg %p125
        %s378 = smul.u32 2, %s32
        %p379 = scmp.lt.s32.totalorder %s378, 3
        %s380 = scalar_select %p379, %s378, 3
        %s381 = scalar_lea.vmem %s4, %s380
        %p382 = pneg %p154
        %p383 = pneg %p151
        %s384 = sand.u32 %s27, 1
        %s385 = scalar_lea.sflag [#allocation8], %s384
        %s386 = sand.u32 %s167, 1
        %s387 = smul.addr %s386, 128
        %s388 = scalar_lea.vmem [#allocation9], %s387
        %p389 = pneg %p180
        %p390 = pneg %p177
        %p391 = pneg %p201
        %p392 = pneg %p198
        %p393 = pneg %p227
        %p394 = pneg %p224
        %s395 = sand.u32 %s214, 1
        %s396 = scalar_lea.sflag [#allocation6], %s395
        %s397 = sand.u32 %s214, 1
        %s398 = smul.addr %s397, 64
        %s399 = scalar_lea.vmem [#allocation10], %s398
        %s400 = smul.u32 8, %s31
        %s401 = smul.u32 2, %s32
        %s402 = smul.u32 2, %s32
        %p403 = scmp.lt.s32.totalorder %s402, 3
        %s404 = scalar_select %p403, %s402, 3
        %s405 = scalar_lea.vmem %s4, %s404
        %s406 = smul.u32 2, %s32
        %s407 = smul.u32 32, %s32
        %s408 = smul.u32 8, %s31
        %p410 = scmp.eq.s32.totalorder %s32, 0
        // Predicated region
        $region61: #{tpu_custom_call.1} parent=47 // pred_check
          %p411 = pneg %p410
        $region62: #{tpu_custom_call.1} parent=47 // pred_check_branch
          %413 = sbr.rel (%p411) target = $region64
        $region63: #{tpu_custom_call.1} parent=47 // pred_region
          %v414 = vld [vmem:[%s337] sm:$0xff]
          %v415 = vld [vmem:[%s337 + $0x8] sm:$0xff]
          %v416 = vld [vmem:[%s337 + $0x10] sm:$0xff]
          %v417 = vld [vmem:[%s337 + $0x18] sm:$0xff]
          %v418 = vld [vmem:[%s337 + $0x20] sm:$0xff]
          %v419 = vld [vmem:[%s337 + $0x28] sm:$0xff]
          %v420 = vld [vmem:[%s337 + $0x30] sm:$0xff]
          %v421 = vld [vmem:[%s337 + $0x38] sm:$0xff]
          %422 = vadd.xlane.f32.xlu0 %v414
          %v423 = vpop.xlane.xlu0 %422
          %424 = vadd.xlane.f32.xlu0 %v415
          %v425 = vpop.xlane.xlu0 %424
          %426 = vadd.xlane.f32.xlu0 %v416
          %v427 = vpop.xlane.xlu0 %426
          %428 = vadd.xlane.f32.xlu0 %v417
          %v429 = vpop.xlane.xlu0 %428
          %430 = vadd.xlane.f32.xlu0 %v418
          %v431 = vpop.xlane.xlu0 %430
          %432 = vadd.xlane.f32.xlu0 %v419
          %v433 = vpop.xlane.xlu0 %432
          %434 = vadd.xlane.f32.xlu0 %v420
          %v435 = vpop.xlane.xlu0 %434
          %436 = vadd.xlane.f32.xlu0 %v421
          %v437 = vpop.xlane.xlu0 %436
          %v438 = vrcp.pop 128.0
          %v439 = vmul.f32 %v423, %v438
          %v440 = vmul.f32 %v425, %v438
          %v441 = vmul.f32 %v427, %v438
          %v442 = vmul.f32 %v429, %v438
          %v443 = vmul.f32 %v431, %v438
          %v444 = vmul.f32 %v433, %v438
          %v445 = vmul.f32 %v435, %v438
          %v446 = vmul.f32 %v437, %v438
          %v447 = vsub.f32 %v414, %v439
          %v448 = vsub.f32 %v415, %v440
          %v449 = vsub.f32 %v416, %v441
          %v450 = vsub.f32 %v417, %v442
          %v451 = vsub.f32 %v418, %v443
          %v452 = vsub.f32 %v419, %v444
          %v453 = vsub.f32 %v420, %v445
          %v454 = vsub.f32 %v421, %v446
          %v455 = vmul.f32 %v447, %v447
          %v456 = vmul.f32 %v448, %v448
          %v457 = vmul.f32 %v449, %v449
          %v458 = vmul.f32 %v450, %v450
          %v459 = vmul.f32 %v451, %v451
          %v460 = vmul.f32 %v452, %v452
          %v461 = vmul.f32 %v453, %v453
          %v462 = vmul.f32 %v454, %v454
          %463 = vadd.xlane.f32.xlu0 %v455
          %v464 = vpop.xlane.xlu0 %463
          %465 = vadd.xlane.f32.xlu0 %v456
          %v466 = vpop.xlane.xlu0 %465
          %467 = vadd.xlane.f32.xlu0 %v457
          %v468 = vpop.xlane.xlu0 %467
          %469 = vadd.xlane.f32.xlu0 %v458
          %v470 = vpop.xlane.xlu0 %469
          %471 = vadd.xlane.f32.xlu0 %v459
          %v472 = vpop.xlane.xlu0 %471
          %473 = vadd.xlane.f32.xlu0 %v460
          %v474 = vpop.xlane.xlu0 %473
          %475 = vadd.xlane.f32.xlu0 %v461
          %v476 = vpop.xlane.xlu0 %475
          %477 = vadd.xlane.f32.xlu0 %v462
          %v478 = vpop.xlane.xlu0 %477
          %v479 = vmul.f32 %v464, %v438
          %v480 = vmul.f32 %v466, %v438
          %v481 = vmul.f32 %v468, %v438
          %v482 = vmul.f32 %v470, %v438
          %v483 = vmul.f32 %v472, %v438
          %v484 = vmul.f32 %v474, %v438
          %v485 = vmul.f32 %v476, %v438
          %v486 = vmul.f32 %v478, %v438
          %v487 = vadd.f32 %v479, 1e-05
          %v488 = vadd.f32 %v480, 1e-05
          %v489 = vadd.f32 %v481, 1e-05
          %v490 = vadd.f32 %v482, 1e-05
          %v491 = vadd.f32 %v483, 1e-05
          %v492 = vadd.f32 %v484, 1e-05
          %v493 = vadd.f32 %v485, 1e-05
          %v494 = vadd.f32 %v486, 1e-05
          %v495 = vrsqrt.pop %v487
          %v496 = vrsqrt.pop %v488
          %v497 = vrsqrt.pop %v489
          %v498 = vrsqrt.pop %v490
          %v499 = vrsqrt.pop %v491
          %v500 = vrsqrt.pop %v492
          %v501 = vrsqrt.pop %v493
          %v502 = vrsqrt.pop %v494
          %v503 = vmul.f32 %v447, %v495
          %v504 = vmul.f32 %v448, %v496
          %v505 = vmul.f32 %v449, %v497
          %v506 = vmul.f32 %v450, %v498
          %v507 = vmul.f32 %v451, %v499
          %v508 = vmul.f32 %v452, %v500
          %v509 = vmul.f32 %v453, %v501
          %v510 = vmul.f32 %v454, %v502
          %v511 = vld [vmem:[%s1] sm:$0x1]
          %v513 = vlaneseq
          %v514 = vshrl.u32 %v513, 7
          %v515 = vsub.s32 0, %v514
          %v516 = vrot.slane %v511, %v515
          %v518 = vmul.f32 %v503, %v516
          %v519 = vmul.f32 %v504, %v516
          %v520 = vmul.f32 %v505, %v516
          %v521 = vmul.f32 %v506, %v516
          %v522 = vmul.f32 %v507, %v516
          %v523 = vmul.f32 %v508, %v516
          %v524 = vmul.f32 %v509, %v516
          %v525 = vmul.f32 %v510, %v516
          %v526 = vld [vmem:[%s2] sm:$0x1]
          %v528 = vlaneseq
          %v529 = vshrl.u32 %v528, 7
          %v530 = vsub.s32 0, %v529
          %v531 = vrot.slane %v526, %v530
          %v533 = vadd.f32 %v518, %v531
          %v534 = vadd.f32 %v519, %v531
          %v535 = vadd.f32 %v520, %v531
          %v536 = vadd.f32 %v521, %v531
          %v537 = vadd.f32 %v522, %v531
          %v538 = vadd.f32 %v523, %v531
          %v539 = vadd.f32 %v524, %v531
          %v540 = vadd.f32 %v525, %v531
          %v541 = vpack.c.bf16 %v534, %v533
          %v542 = vpack.c.bf16 %v536, %v535
          %v543 = vpack.c.bf16 %v538, %v537
          %v544 = vpack.c.bf16 %v540, %v539
          %v549 = vunpack.c.l.b16 %v541
          %v550 = vunpack.c.h.b16 %v541
          %v551 = vunpack.c.l.b16 %v542
          %v552 = vunpack.c.h.b16 %v542
          %v553 = vunpack.c.l.b16 %v543
          %v554 = vunpack.c.h.b16 %v543
          %v555 = vunpack.c.l.b16 %v544
          %v556 = vunpack.c.h.b16 %v544
          %v557 = vpack.c.b16 %v549, %v549
          %v558 = vpack.c.b16 %v550, %v550
          %v559 = vpack.c.b16 %v551, %v551
          %v560 = vpack.c.b16 %v552, %v552
          %v561 = vpack.c.b16 %v553, %v553
          %v562 = vpack.c.b16 %v554, %v554
          %v563 = vpack.c.b16 %v555, %v555
          %v564 = vpack.c.b16 %v556, %v556
          %573 = vst [vmem:[#allocation2] sm:$0xf] %v557
          %574 = vst [vmem:[#allocation2 + $0x4] sm:$0xf] %v558
          %575 = vst [vmem:[#allocation2 + $0x8] sm:$0xf] %v559
          %576 = vst [vmem:[#allocation2 + $0xc] sm:$0xf] %v560
          %577 = vst [vmem:[#allocation2 + $0x10] sm:$0xf] %v561
          %578 = vst [vmem:[#allocation2 + $0x14] sm:$0xf] %v562
          %579 = vst [vmem:[#allocation2 + $0x18] sm:$0xf] %v563
          %580 = vst [vmem:[#allocation2 + $0x1c] sm:$0xf] %v564
          %581 = vst [vmem:[#allocation3] sm:$0xff] 0.0
          %582 = vst [vmem:[#allocation3 + $0x8] sm:$0xff] 0.0
          %583 = vst [vmem:[#allocation3 + $0x10] sm:$0xff] 0.0
          %584 = vst [vmem:[#allocation3 + $0x18] sm:$0xff] 0.0
          %585 = vst [vmem:[#allocation3 + $0x20] sm:$0xff] 0.0
          %586 = vst [vmem:[#allocation3 + $0x28] sm:$0xff] 0.0
          %587 = vst [vmem:[#allocation3 + $0x30] sm:$0xff] 0.0
          %588 = vst [vmem:[#allocation3 + $0x38] sm:$0xff] 0.0
        $region64: #{tpu_custom_call.1} parent=47 // pred_fallthru
          _
        %v589 = vld [vmem:[#allocation2] sm:$0xf]
        %v590 = vld [vmem:[#allocation2 + $0x4] sm:$0xf]
        %v591 = vld [vmem:[#allocation2 + $0x8] sm:$0xf]
        %v592 = vld [vmem:[#allocation2 + $0xc] sm:$0xf]
        %v593 = vld [vmem:[#allocation2 + $0x10] sm:$0xf]
        %v594 = vld [vmem:[#allocation2 + $0x14] sm:$0xf]
        %v595 = vld [vmem:[#allocation2 + $0x18] sm:$0xf]
        %v596 = vld [vmem:[#allocation2 + $0x1c] sm:$0xf]
        %v597 = vld [vmem:[%s346] sm:$0xff]
        %v598 = vld [vmem:[%s346 + $0x8] sm:$0xff]
        %v599 = vld [vmem:[%s346 + $0x10] sm:$0xff]
        %v600 = vld [vmem:[%s346 + $0x18] sm:$0xff]
        %v601 = vld [vmem:[%s346 + $0x20] sm:$0xff]
        %v602 = vld [vmem:[%s346 + $0x28] sm:$0xff]
        %v603 = vld [vmem:[%s346 + $0x30] sm:$0xff]
        %v604 = vld [vmem:[%s346 + $0x38] sm:$0xff]
        %v605 = vld [vmem:[%s346 + $0x40] sm:$0xff]
        %v606 = vld [vmem:[%s346 + $0x48] sm:$0xff]
        %v607 = vld [vmem:[%s346 + $0x50] sm:$0xff]
        %v608 = vld [vmem:[%s346 + $0x58] sm:$0xff]
        %v609 = vld [vmem:[%s346 + $0x60] sm:$0xff]
        %v610 = vld [vmem:[%s346 + $0x68] sm:$0xff]
        %v611 = vld [vmem:[%s346 + $0x70] sm:$0xff]
        %v612 = vld [vmem:[%s346 + $0x78] sm:$0xff]
        %v613 = vld [vmem:[%s405] sm:$0x3]
        %v615 = vlaneseq
        %v616 = vshrl.u32 %v615, 7
        %v617 = vsub.s32 0, %v616
        %v618 = vrot.slane %v613, %v617
        %v619 = vlaneseq
        %v620 = vshrl.u32 %v619, 7
        %v621 = vsub.s32 1, %v620
        %v622 = vrot.slane %v613, %v621
        %v633 = vunpack.c.l.b16 %v589
        %v634 = vunpack.c.l.b16 %v590
        %v635 = vunpack.c.l.b16 %v591
        %v636 = vunpack.c.l.b16 %v592
        %v637 = vunpack.c.l.b16 %v593
        %v638 = vunpack.c.l.b16 %v594
        %v639 = vunpack.c.l.b16 %v595
        %v640 = vunpack.c.l.b16 %v596
        %v641 = vpack.c.b16 %v634, %v633
        %v642 = vpack.c.b16 %v636, %v635
        %v643 = vpack.c.b16 %v638, %v637
        %v644 = vpack.c.b16 %v640, %v639
        %v665 = vunpack.c.l.b16 %v597
        %v666 = vunpack.c.h.b16 %v597
        %v667 = vunpack.c.l.b16 %v598
        %v668 = vunpack.c.h.b16 %v598
        %v669 = vunpack.c.l.b16 %v599
        %v670 = vunpack.c.h.b16 %v599
        %v671 = vunpack.c.l.b16 %v600
        %v672 = vunpack.c.h.b16 %v600
        %v673 = vunpack.c.l.b16 %v601
        %v674 = vunpack.c.h.b16 %v601
        %v675 = vunpack.c.l.b16 %v602
        %v676 = vunpack.c.h.b16 %v602
        %v677 = vunpack.c.l.b16 %v603
        %v678 = vunpack.c.h.b16 %v603
        %v679 = vunpack.c.l.b16 %v604
        %v680 = vunpack.c.h.b16 %v604
        %v681 = vunpack.c.l.b16 %v605
        %v682 = vunpack.c.h.b16 %v605
        %v683 = vunpack.c.l.b16 %v606
        %v684 = vunpack.c.h.b16 %v606
        %v685 = vunpack.c.l.b16 %v607
        %v686 = vunpack.c.h.b16 %v607
        %v687 = vunpack.c.l.b16 %v608
        %v688 = vunpack.c.h.b16 %v608
        %v689 = vunpack.c.l.b16 %v609
        %v690 = vunpack.c.h.b16 %v609
        %v691 = vunpack.c.l.b16 %v610
        %v692 = vunpack.c.h.b16 %v610
        %v693 = vunpack.c.l.b16 %v611
        %v694 = vunpack.c.h.b16 %v611
        %v695 = vunpack.c.l.b16 %v612
        %v696 = vunpack.c.h.b16 %v612
        %v697 = vpack.c.b16 %v667, %v665
        %v698 = vpack.c.b16 %v668, %v666
        %v699 = vpack.c.b16 %v671, %v669
        %v700 = vpack.c.b16 %v672, %v670
        %v701 = vpack.c.b16 %v675, %v673
        %v702 = vpack.c.b16 %v676, %v674
        %v703 = vpack.c.b16 %v679, %v677
        %v704 = vpack.c.b16 %v680, %v678
        %v705 = vpack.c.b16 %v683, %v681
        %v706 = vpack.c.b16 %v684, %v682
        %v707 = vpack.c.b16 %v687, %v685
        %v708 = vpack.c.b16 %v688, %v686
        %v709 = vpack.c.b16 %v691, %v689
        %v710 = vpack.c.b16 %v692, %v690
        %v711 = vpack.c.b16 %v695, %v693
        %v712 = vpack.c.b16 %v696, %v694
        %729 = vmatprep.subr.bf16.mxu0 %v712
        %730 = vmatpush1.bf16.msra.mxu0 %v711
        %731 = vmatprep.subr.bf16.mxu0 %v710
        %732 = vmatpush1.bf16.msra.mxu0 %v709
        %733 = vmatprep.subr.bf16.mxu0 %v708
        %734 = vmatpush1.bf16.msra.mxu0 %v707
        %735 = vmatprep.subr.bf16.mxu0 %v706
        %736 = vmatpush1.bf16.msra.mxu0 %v705
        %737 = vmatprep.subr.bf16.mxu0 %v704
        %738 = vmatpush1.bf16.msra.mxu0 %v703
        %739 = vmatprep.subr.bf16.mxu0 %v702
        %740 = vmatpush1.bf16.msra.mxu0 %v701
        %741 = vmatprep.subr.bf16.mxu0 %v700
        %742 = vmatpush1.bf16.msra.mxu0 %v699
        %743 = vmatprep.subr.bf16.mxu0 %v698
        %744 = vmatpush1.bf16.msra.mxu0 %v697
        %745 = vmatprep.subr.bf16.mxu0 0
        %746 = vmatpush2.bf16.msra.mxu0 0
        %747 = vmatprep.subr.bf16.mxu0 0
        %748 = vmatpush2.bf16.msra.mxu0 0
        %749 = vmatprep.subr.bf16.mxu0 0
        %750 = vmatpush2.bf16.msra.mxu0 0
        %751 = vmatprep.subr.bf16.mxu0 0
        %752 = vmatpush2.bf16.msra.mxu0 0
        %753 = vmatprep.subr.bf16.mxu0 0
        %754 = vmatpush2.bf16.msra.mxu0 0
        %755 = vmatprep.subr.bf16.mxu0 0
        %756 = vmatpush2.bf16.msra.mxu0 0
        %757 = vmatprep.subr.bf16.mxu0 0
        %758 = vmatpush2.bf16.msra.mxu0 0
        %759 = vmatprep.subr.bf16.mxu0 0
        %760 = vmatpush2.bf16.msra.mxu0 0
        %761 = vmatprep.mubr.bf16.mxu0 0
        %762 = vmatmul.mubr.bf16.gmra.mxu0 %v641
        %v763 = vpop.f32.mrf.mxu0
        %v764 = vadd.f32 %v618, %v763
        %v765 = vpop.f32.mrf.mxu0
        %v766 = vadd.f32 %v622, %v765
        %v767 = vpop.f32.mrf.mxu0
        %v768 = vadd.f32 %v618, %v767
        %v769 = vpop.f32.mrf.mxu0
        %v770 = vadd.f32 %v622, %v769
        %771 = vmatprep.mubr.bf16.mxu0 0
        %772 = vmatmul.mubr.bf16.gmra.mxu0 %v642
        %v773 = vpop.f32.mrf.mxu0
        %v774 = vadd.f32 %v618, %v773
        %v775 = vpop.f32.mrf.mxu0
        %v776 = vadd.f32 %v622, %v775
        %v777 = vpop.f32.mrf.mxu0
        %v778 = vadd.f32 %v618, %v777
        %v779 = vpop.f32.mrf.mxu0
        %v780 = vadd.f32 %v622, %v779
        %781 = vmatprep.mubr.bf16.mxu0 0
        %782 = vmatmul.mubr.bf16.gmra.mxu0 %v643
        %v783 = vpop.f32.mrf.mxu0
        %v784 = vadd.f32 %v618, %v783
        %v785 = vpop.f32.mrf.mxu0
        %v786 = vadd.f32 %v622, %v785
        %v787 = vpop.f32.mrf.mxu0
        %v788 = vadd.f32 %v618, %v787
        %v789 = vpop.f32.mrf.mxu0
        %v790 = vadd.f32 %v622, %v789
        %791 = vmatprep.mubr.bf16.mxu0 0
        %792 = vmatmul.mubr.bf16.gmra.mxu0 %v644
        %v793 = vpop.f32.mrf.mxu0
        %v794 = vadd.f32 %v618, %v793
        %v795 = vpop.f32.mrf.mxu0
        %v796 = vadd.f32 %v622, %v795
        %v797 = vpop.f32.mrf.mxu0
        %v798 = vadd.f32 %v618, %v797
        %v799 = vpop.f32.mrf.mxu0
        %v800 = vadd.f32 %v622, %v799
        %801 = vdwg.mxu0
        %v802 = vmul.f32 %v764, 0.5
        %v803 = vmul.f32 %v766, 0.5
        %v804 = vmul.f32 %v768, 0.5
        %v805 = vmul.f32 %v770, 0.5
        %v806 = vmul.f32 %v774, 0.5
        %v807 = vmul.f32 %v776, 0.5
        %v808 = vmul.f32 %v778, 0.5
        %v809 = vmul.f32 %v780, 0.5
        %v810 = vmul.f32 %v784, 0.5
        %v811 = vmul.f32 %v786, 0.5
        %v812 = vmul.f32 %v788, 0.5
        %v813 = vmul.f32 %v790, 0.5
        %v814 = vmul.f32 %v794, 0.5
        %v815 = vmul.f32 %v796, 0.5
        %v816 = vmul.f32 %v798, 0.5
        %v817 = vmul.f32 %v800, 0.5
        %v818 = vmul.f32 %v764, 0.70710677
        %v819 = vmul.f32 %v766, 0.70710677
        %v820 = vmul.f32 %v768, 0.70710677
        %v821 = vmul.f32 %v770, 0.70710677
        %v822 = vmul.f32 %v774, 0.70710677
        %v823 = vmul.f32 %v776, 0.70710677
        %v824 = vmul.f32 %v778, 0.70710677
        %v825 = vmul.f32 %v780, 0.70710677
        %v826 = vmul.f32 %v784, 0.70710677
        %v827 = vmul.f32 %v786, 0.70710677
        %v828 = vmul.f32 %v788, 0.70710677
        %v829 = vmul.f32 %v790, 0.70710677
        %v830 = vmul.f32 %v794, 0.70710677
        %v831 = vmul.f32 %v796, 0.70710677
        %v832 = vmul.f32 %v798, 0.70710677
        %v833 = vmul.f32 %v800, 0.70710677
        %v834 = verf.f32.pop %v818
        %v835 = verf.f32.pop %v819
        %v836 = verf.f32.pop %v820
        %v837 = verf.f32.pop %v821
        %v838 = verf.f32.pop %v822
        %v839 = verf.f32.pop %v823
        %v840 = verf.f32.pop %v824
        %v841 = verf.f32.pop %v825
        %v842 = verf.f32.pop %v826
        %v843 = verf.f32.pop %v827
        %v844 = verf.f32.pop %v828
        %v845 = verf.f32.pop %v829
        %v846 = verf.f32.pop %v830
        %v847 = verf.f32.pop %v831
        %v848 = verf.f32.pop %v832
        %v849 = verf.f32.pop %v833
        %v850 = vadd.f32 %v834, 1.0
        %v851 = vadd.f32 %v835, 1.0
        %v852 = vadd.f32 %v836, 1.0
        %v853 = vadd.f32 %v837, 1.0
        %v854 = vadd.f32 %v838, 1.0
        %v855 = vadd.f32 %v839, 1.0
        %v856 = vadd.f32 %v840, 1.0
        %v857 = vadd.f32 %v841, 1.0
        %v858 = vadd.f32 %v842, 1.0
        %v859 = vadd.f32 %v843, 1.0
        %v860 = vadd.f32 %v844, 1.0
        %v861 = vadd.f32 %v845, 1.0
        %v862 = vadd.f32 %v846, 1.0
        %v863 = vadd.f32 %v847, 1.0
        %v864 = vadd.f32 %v848, 1.0
        %v865 = vadd.f32 %v849, 1.0
        %v866 = vmul.f32 %v802, %v850
        %v867 = vmul.f32 %v803, %v851
        %v868 = vmul.f32 %v804, %v852
        %v869 = vmul.f32 %v805, %v853
        %v870 = vmul.f32 %v806, %v854
        %v871 = vmul.f32 %v807, %v855
        %v872 = vmul.f32 %v808, %v856
        %v873 = vmul.f32 %v809, %v857
        %v874 = vmul.f32 %v810, %v858
        %v875 = vmul.f32 %v811, %v859
        %v876 = vmul.f32 %v812, %v860
        %v877 = vmul.f32 %v813, %v861
        %v878 = vmul.f32 %v814, %v862
        %v879 = vmul.f32 %v815, %v863
        %v880 = vmul.f32 %v816, %v864
        %v881 = vmul.f32 %v817, %v865
        %v882 = vld [vmem:[#allocation3] sm:$0xff]
        %v883 = vld [vmem:[#allocation3 + $0x8] sm:$0xff]
        %v884 = vld [vmem:[#allocation3 + $0x10] sm:$0xff]
        %v885 = vld [vmem:[#allocation3 + $0x18] sm:$0xff]
        %v886 = vld [vmem:[#allocation3 + $0x20] sm:$0xff]
        %v887 = vld [vmem:[#allocation3 + $0x28] sm:$0xff]
        %v888 = vld [vmem:[#allocation3 + $0x30] sm:$0xff]
        %v889 = vld [vmem:[#allocation3 + $0x38] sm:$0xff]
        %v890 = vpack.c.bf16 %v868, %v866
        %v891 = vpack.c.bf16 %v869, %v867
        %v892 = vpack.c.bf16 %v872, %v870
        %v893 = vpack.c.bf16 %v873, %v871
        %v894 = vpack.c.bf16 %v876, %v874
        %v895 = vpack.c.bf16 %v877, %v875
        %v896 = vpack.c.bf16 %v880, %v878
        %v897 = vpack.c.bf16 %v881, %v879
        %v898 = vld [vmem:[%s355] sm:$0xf]
        %v899 = vld [vmem:[%s355 + $0x4] sm:$0xf]
        %v900 = vld [vmem:[%s355 + $0x8] sm:$0xf]
        %v901 = vld [vmem:[%s355 + $0xc] sm:$0xf]
        %v902 = vld [vmem:[%s355 + $0x10] sm:$0xf]
        %v903 = vld [vmem:[%s355 + $0x14] sm:$0xf]
        %v904 = vld [vmem:[%s355 + $0x18] sm:$0xf]
        %v905 = vld [vmem:[%s355 + $0x1c] sm:$0xf]
        %v906 = vld [vmem:[%s355 + $0x20] sm:$0xf]
        %v907 = vld [vmem:[%s355 + $0x24] sm:$0xf]
        %v908 = vld [vmem:[%s355 + $0x28] sm:$0xf]
        %v909 = vld [vmem:[%s355 + $0x2c] sm:$0xf]
        %v910 = vld [vmem:[%s355 + $0x30] sm:$0xf]
        %v911 = vld [vmem:[%s355 + $0x34] sm:$0xf]
        %v912 = vld [vmem:[%s355 + $0x38] sm:$0xf]
        %v913 = vld [vmem:[%s355 + $0x3c] sm:$0xf]
        %v914 = vld [vmem:[%s355 + $0x40] sm:$0xf]
        %v915 = vld [vmem:[%s355 + $0x44] sm:$0xf]
        %v916 = vld [vmem:[%s355 + $0x48] sm:$0xf]
        %v917 = vld [vmem:[%s355 + $0x4c] sm:$0xf]
        %v918 = vld [vmem:[%s355 + $0x50] sm:$0xf]
        %v919 = vld [vmem:[%s355 + $0x54] sm:$0xf]
        %v920 = vld [vmem:[%s355 + $0x58] sm:$0xf]
        %v921 = vld [vmem:[%s355 + $0x5c] sm:$0xf]
        %v922 = vld [vmem:[%s355 + $0x60] sm:$0xf]
        %v923 = vld [vmem:[%s355 + $0x64] sm:$0xf]
        %v924 = vld [vmem:[%s355 + $0x68] sm:$0xf]
        %v925 = vld [vmem:[%s355 + $0x6c] sm:$0xf]
        %v926 = vld [vmem:[%s355 + $0x70] sm:$0xf]
        %v927 = vld [vmem:[%s355 + $0x74] sm:$0xf]
        %v928 = vld [vmem:[%s355 + $0x78] sm:$0xf]
        %v929 = vld [vmem:[%s355 + $0x7c] sm:$0xf]
        %v962 = vunpack.c.l.b16 %v898
        %v963 = vunpack.c.l.b16 %v899
        %v964 = vunpack.c.l.b16 %v900
        %v965 = vunpack.c.l.b16 %v901
        %v966 = vunpack.c.l.b16 %v902
        %v967 = vunpack.c.l.b16 %v903
        %v968 = vunpack.c.l.b16 %v904
        %v969 = vunpack.c.l.b16 %v905
        %v970 = vunpack.c.l.b16 %v906
        %v971 = vunpack.c.l.b16 %v907
        %v972 = vunpack.c.l.b16 %v908
        %v973 = vunpack.c.l.b16 %v909
        %v974 = vunpack.c.l.b16 %v910
        %v975 = vunpack.c.l.b16 %v911
        %v976 = vunpack.c.l.b16 %v912
        %v977 = vunpack.c.l.b16 %v913
        %v978 = vunpack.c.l.b16 %v914
        %v979 = vunpack.c.l.b16 %v915
        %v980 = vunpack.c.l.b16 %v916
        %v981 = vunpack.c.l.b16 %v917
        %v982 = vunpack.c.l.b16 %v918
        %v983 = vunpack.c.l.b16 %v919
        %v984 = vunpack.c.l.b16 %v920
        %v985 = vunpack.c.l.b16 %v921
        %v986 = vunpack.c.l.b16 %v922
        %v987 = vunpack.c.l.b16 %v923
        %v988 = vunpack.c.l.b16 %v924
        %v989 = vunpack.c.l.b16 %v925
        %v990 = vunpack.c.l.b16 %v926
        %v991 = vunpack.c.l.b16 %v927
        %v992 = vunpack.c.l.b16 %v928
        %v993 = vunpack.c.l.b16 %v929
        %v994 = vpack.c.b16 %v963, %v962
        %v995 = vpack.c.b16 %v965, %v964
        %v996 = vpack.c.b16 %v967, %v966
        %v997 = vpack.c.b16 %v969, %v968
        %v998 = vpack.c.b16 %v971, %v970
        %v999 = vpack.c.b16 %v973, %v972
        %v1000 = vpack.c.b16 %v975, %v974
        %v1001 = vpack.c.b16 %v977, %v976
        %v1002 = vpack.c.b16 %v979, %v978
        %v1003 = vpack.c.b16 %v981, %v980
        %v1004 = vpack.c.b16 %v983, %v982
        %v1005 = vpack.c.b16 %v985, %v984
        %v1006 = vpack.c.b16 %v987, %v986
        %v1007 = vpack.c.b16 %v989, %v988
        %v1008 = vpack.c.b16 %v991, %v990
        %v1009 = vpack.c.b16 %v993, %v992
        %1026 = vmatprep.subr.bf16.mxu0 0
        %1027 = vmatpush1.bf16.msra.mxu0 %v1001
        %1028 = vmatprep.subr.bf16.mxu0 0
        %1029 = vmatpush1.bf16.msra.mxu0 %v1000
        %1030 = vmatprep.subr.bf16.mxu0 0
        %1031 = vmatpush1.bf16.msra.mxu0 %v999
        %1032 = vmatprep.subr.bf16.mxu0 0
        %1033 = vmatpush1.bf16.msra.mxu0 %v998
        %1034 = vmatprep.subr.bf16.mxu0 0
        %1035 = vmatpush1.bf16.msra.mxu0 %v997
        %1036 = vmatprep.subr.bf16.mxu0 0
        %1037 = vmatpush1.bf16.msra.mxu0 %v996
        %1038 = vmatprep.subr.bf16.mxu0 0
        %1039 = vmatpush1.bf16.msra.mxu0 %v995
        %1040 = vmatprep.subr.bf16.mxu0 0
        %1041 = vmatpush1.bf16.msra.mxu0 %v994
        %1042 = vmatprep.subr.bf16.mxu0 0
        %1043 = vmatpush2.bf16.msra.mxu0 %v1009
        %1044 = vmatprep.subr.bf16.mxu0 0
        %1045 = vmatpush2.bf16.msra.mxu0 %v1008
        %1046 = vmatprep.subr.bf16.mxu0 0
        %1047 = vmatpush2.bf16.msra.mxu0 %v1007
        %1048 = vmatprep.subr.bf16.mxu0 0
        %1049 = vmatpush2.bf16.msra.mxu0 %v1006
        %1050 = vmatprep.subr.bf16.mxu0 0
        %1051 = vmatpush2.bf16.msra.mxu0 %v1005
        %1052 = vmatprep.subr.bf16.mxu0 0
        %1053 = vmatpush2.bf16.msra.mxu0 %v1004
        %1054 = vmatprep.subr.bf16.mxu0 0
        %1055 = vmatpush2.bf16.msra.mxu0 %v1003
        %1056 = vmatprep.subr.bf16.mxu0 0
        %1057 = vmatpush2.bf16.msra.mxu0 %v1002
        %1058 = vmatprep.mubr.bf16.mxu0 %v891
        %1059 = vmatmul.mubr.bf16.gmra.mxu0 %v890
        %v1060 = vpop.f32.mrf.mxu0
        %v1061 = vadd.f32 0.0, %v1060
        %v1062 = vpop.f32.mrf.mxu0
        %v1063 = vpop.f32.mrf.mxu0
        %v1064 = vadd.f32 0.0, %v1063
        %v1065 = vpop.f32.mrf.mxu0
        %1066 = vmatprep.mubr.bf16.mxu0 %v893
        %1067 = vmatmul.mubr.bf16.gmra.mxu0 %v892
        %v1068 = vpop.f32.mrf.mxu0
        %v1069 = vadd.f32 0.0, %v1068
        %v1070 = vpop.f32.mrf.mxu0
        %v1071 = vpop.f32.mrf.mxu0
        %v1072 = vadd.f32 0.0, %v1071
        %v1073 = vpop.f32.mrf.mxu0
        %1074 = vmatprep.mubr.bf16.mxu0 %v895
        %1075 = vmatmul.mubr.bf16.gmra.mxu0 %v894
        %v1076 = vpop.f32.mrf.mxu0
        %v1077 = vadd.f32 0.0, %v1076
        %v1078 = vpop.f32.mrf.mxu0
        %v1079 = vpop.f32.mrf.mxu0
        %v1080 = vadd.f32 0.0, %v1079
        %v1081 = vpop.f32.mrf.mxu0
        %1082 = vmatprep.mubr.bf16.mxu0 %v897
        %1083 = vmatmul.mubr.bf16.gmra.mxu0 %v896
        %v1084 = vpop.f32.mrf.mxu0
        %v1085 = vadd.f32 0.0, %v1084
        %v1086 = vpop.f32.mrf.mxu0
        %v1087 = vpop.f32.mrf.mxu0
        %v1088 = vadd.f32 0.0, %v1087
        %v1089 = vpop.f32.mrf.mxu0
        %1090 = vdwg.mxu0
        %v1091 = vadd.f32 %v882, %v1061
        %v1092 = vadd.f32 %v883, %v1064
        %v1093 = vadd.f32 %v884, %v1069
        %v1094 = vadd.f32 %v885, %v1072
        %v1095 = vadd.f32 %v886, %v1077
        %v1096 = vadd.f32 %v887, %v1080
        %v1097 = vadd.f32 %v888, %v1085
        %v1098 = vadd.f32 %v889, %v1088
        %1099 = vst [vmem:[#allocation3] sm:$0xff] %v1091
        %1100 = vst [vmem:[#allocation3 + $0x8] sm:$0xff] %v1092
        %1101 = vst [vmem:[#allocation3 + $0x10] sm:$0xff] %v1093
        %1102 = vst [vmem:[#allocation3 + $0x18] sm:$0xff] %v1094
        %1103 = vst [vmem:[#allocation3 + $0x20] sm:$0xff] %v1095
        %1104 = vst [vmem:[#allocation3 + $0x28] sm:$0xff] %v1096
        %1105 = vst [vmem:[#allocation3 + $0x30] sm:$0xff] %v1097
        %1106 = vst [vmem:[#allocation3 + $0x38] sm:$0xff] %v1098
        %p1107 = scmp.eq.s32.totalorder %s32, 1
        // Predicated region
        $region65: #{tpu_custom_call.1} parent=47 // pred_check
          %p1108 = pneg %p1107
        $region66: #{tpu_custom_call.1} parent=47 // pred_check_branch
          %1110 = sbr.rel (%p1108) target = $region68
        $region67: #{tpu_custom_call.1} parent=47 // pred_region
          %v1111 = vld [vmem:[#allocation3] sm:$0xff]
          %v1112 = vld [vmem:[#allocation3 + $0x8] sm:$0xff]
          %v1113 = vld [vmem:[#allocation3 + $0x10] sm:$0xff]
          %v1114 = vld [vmem:[#allocation3 + $0x18] sm:$0xff]
          %v1115 = vld [vmem:[#allocation3 + $0x20] sm:$0xff]
          %v1116 = vld [vmem:[#allocation3 + $0x28] sm:$0xff]
          %v1117 = vld [vmem:[#allocation3 + $0x30] sm:$0xff]
          %v1118 = vld [vmem:[#allocation3 + $0x38] sm:$0xff]
          %v1119 = vld [vmem:[%s6] sm:$0x1]
          %v1121 = vlaneseq
          %v1122 = vshrl.u32 %v1121, 7
          %v1123 = vsub.s32 0, %v1122
          %v1124 = vrot.slane %v1119, %v1123
          %v1126 = vadd.f32 %v1111, %v1124
          %v1127 = vadd.f32 %v1112, %v1124
          %v1128 = vadd.f32 %v1113, %v1124
          %v1129 = vadd.f32 %v1114, %v1124
          %v1130 = vadd.f32 %v1115, %v1124
          %v1131 = vadd.f32 %v1116, %v1124
          %v1132 = vadd.f32 %v1117, %v1124
          %v1133 = vadd.f32 %v1118, %v1124
          %1134 = vst [vmem:[%s399] sm:$0xff] %v1126
          %1135 = vst [vmem:[%s399 + $0x8] sm:$0xff] %v1127
          %1136 = vst [vmem:[%s399 + $0x10] sm:$0xff] %v1128
          %1137 = vst [vmem:[%s399 + $0x18] sm:$0xff] %v1129
          %1138 = vst [vmem:[%s399 + $0x20] sm:$0xff] %v1130
          %1139 = vst [vmem:[%s399 + $0x28] sm:$0xff] %v1131
          %1140 = vst [vmem:[%s399 + $0x30] sm:$0xff] %v1132
          %1141 = vst [vmem:[%s399 + $0x38] sm:$0xff] %v1133
        $region68: #{tpu_custom_call.1} parent=47 // pred_fallthru
          _
        %s1142 = sand.u32 %s214, 1
        %s1143 = scalar_lea.sflag [#allocation6], %s1142
        %s1144 = sand.u32 %s214, 1
        %s1145 = smul.addr %s1144, 64
        %s1146 = scalar_lea.vmem [#allocation10], %s1145
        // Predicated region
        $region69: #{tpu_custom_call.1} parent=47 // pred_check
          %p1147 = pneg %p224
        $region70: #{tpu_custom_call.1} parent=47 // pred_check_branch
          %1149 = sbr.rel (%p1147) target = $region72
        $region71: #{tpu_custom_call.1} parent=47 // pred_region
          %s1150 = smul.u32 8, %s31
          %s1152 = ssub.s32 1024, 1024
          %1153 = vsyncadd %s1143, %s1152
          %s1154 = smul.addr %s1150, 128
          %s1155 = scalar_lea.hbm %s7, %s1154
          %s1156 = sshll.u32 %s1146, 4
          %s1157 = int_to_ptr.vmem [resolvable:$true] %s1156
          %1162 = dma.vmem_to_hbm [thread:$0]  %s1157, 1024, %s1155, %s1143, 128, 128, 8
        $region72: #{tpu_custom_call.1} parent=47 // pred_fallthru
          _
      $region48: #{tpu_custom_call.1} parent=5 // pred_fallthru
        _
      %p1163 = scmp.le.s32.totalorder 2, %s22
      // Predicated region
      $region73: #{tpu_custom_call.1} parent=5 // pred_check
        %p1164 = pneg %p1163
      $region74: #{tpu_custom_call.1} parent=5 // pred_check_branch
        %1166 = sbr.rel (%p1164) target = $region76
      $region75: #{tpu_custom_call.1} parent=5 // pred_region
        %s1167 = ssub.s32 %s22, 2
        // Predicated region
        $region77: #{tpu_custom_call.1} parent=75 // pred_check
          %p1168 = pneg %p230
        $region78: #{tpu_custom_call.1} parent=75 // pred_check_branch
          %1170 = sbr.rel (%p1168) target = $region80
        $region79: #{tpu_custom_call.1} parent=75 // pred_region
          %s1171 = sand.u32 %s215, 1
          %s1172 = scalar_lea.sflag [#allocation6], %s1171
          %s1173 = sand.u32 %s215, 1
          %s1174 = smul.addr %s1173, 64
          %s1175 = scalar_lea.vmem [#allocation10], %s1174
          %1176 = dma.done %s1172, 1024
        $region80: #{tpu_custom_call.1} parent=75 // pred_fallthru
          _
      $region76: #{tpu_custom_call.1} parent=5 // pred_fallthru
        _
    $region6: #{tpu_custom_call.1} parent=1 // loop_footer
      %s26 = sadd.s32 1, %s22
    $region7: #{tpu_custom_call.1} parent=1 // loop_footer_branch
      %21 = sbr.rel target = $region3
    $region8: #{tpu_custom_call.1} parent=1 // loop_exit
      _
    %1177 = vsyncpa [#allocation5], 1
    %s1178 = scalar_lea.sflag [#allocation5], 1
    %1179 = vsyncpa %s1178, 1
    %1180 = vsyncpa [#allocation8], 1
    %s1181 = scalar_lea.sflag [#allocation8], 1
    %1182 = vsyncpa %s1181, 1
    %1183 = vsyncpa [#allocation6], 1
    %s1184 = scalar_lea.sflag [#allocation6], 1
    %1185 = vsyncpa %s1184, 1

</llo_original>
